<compile_context>
chip_gen: v7x
topology: tpu7x:2x2x1
jax: 0.10.0
libtpu: 0.0.40
codegen_flags: <defaults>
</compile_context>

<pallas_src>
import functools
import math

import jax
import jax.numpy as jnp
from jax.experimental import pallas as pl
from jax.experimental.pallas import tpu as pltpu


# Above the 16 MiB (v5e) / 32 MiB (v6e, v7x) scoped defaults, below v7x's 64 MiB physical.
_VMEM_LIMIT_BYTES = 48 * 1024 * 1024


def _tile_size(total, preferred):
    """Largest tile that divides `total`, preferring `preferred`; falls back to full extent."""
    if total <= preferred or total % preferred == 0:
        return min(total, preferred)
    # TODO(synk): odd sequence lengths fall back to a single (untiled) block.
    return total


# ------------------------- Stage 1: fused QKV projection ---------------------

def _qkv_projection_kernel(x_ref, w_ref, b_ref, q_ref, k_ref, v_ref, *,
                           num_heads, head_dim):
    """x (ts, E) f32, w (E, 3E) bf16, b (1, 3E) f32 -> q/k/v (H, ts, D) bf16.

    The 1/sqrt(head_dim) scale is already folded into the q columns of w/b.
    """
    embed_dim = num_heads * head_dim
    ts = x_ref.shape[0]

    x = x_ref[...].astype(jnp.bfloat16)                       # bf16 MXU operand
    qkv = (jnp.dot(x, w_ref[...], preferred_element_type=jnp.float32)
           + b_ref[...])                                       # (ts, 3E) f32 accumulate

    def split_heads(t):                                        # (ts, E) -> (H, ts, D)
        return t.reshape(ts, num_heads, head_dim).transpose(1, 0, 2)

    q_ref[...] = split_heads(qkv[:, :embed_dim]).astype(q_ref.dtype)
    k_ref[...] = split_heads(qkv[:, embed_dim:2 * embed_dim]).astype(k_ref.dtype)
    v_ref[...] = split_heads(qkv[:, 2 * embed_dim:]).astype(v_ref.dtype)


# ----------------- Stage 2: head-batched flash attention ---------------------

def _flash_attention_kernel(q_ref, k_ref, v_ref, o_ref, m_sc, l_sc, acc_sc):
    """q (H, tq, D), k/v (H, tkv, D) bf16 -> o (tq, E); online softmax over the KV axis."""
    ki = pl.program_id(2)

    @pl.when(ki == 0)
    def _():
        m_sc[...] = jnp.full_like(m_sc[...], -jnp.inf)
        l_sc[...] = jnp.zeros_like(l_sc[...])
        acc_sc[...] = jnp.zeros_like(acc_sc[...])

    # Head-batched scores: a single dot_general with a leading head (batch) dim.
    s = jnp.einsum("hqd,hkd->hqk", q_ref[...], k_ref[...],
                   preferred_element_type=jnp.float32)         # (H, tq, tkv) f32
    m_new = jnp.maximum(m_sc[...], jnp.max(s, axis=-1, keepdims=True))
    alpha = jnp.exp(m_sc[...] - m_new)                         # f32 softmax stats (v5e-safe)
    p = jnp.exp(s - m_new)
    l_sc[...] = alpha * l_sc[...] + jnp.sum(p, axis=-1, keepdims=True)
    acc_sc[...] = alpha * acc_sc[...] + jnp.einsum(
        "hqk,hkd->hqd", p.astype(v_ref.dtype), v_ref[...],
        preferred_element_type=jnp.float32)                    # bf16 MXU operands, f32 acc
    m_sc[...] = m_new

    @pl.when(ki == pl.num_programs(2) - 1)
    def _():
        # Normalize AFTER the PV matmul: O(tq*E) work, EUP approximate reciprocal.
        ctx = acc_sc[...] * pl.reciprocal(l_sc[...], approx=True)   # (H, tq, D) f32
        num_heads, tq, head_dim = ctx.shape
        # Merge heads -> lane-dense (tq, E) slab -> single unmasked store per Q block.
        o_ref[...] = ctx.transpose(1, 0, 2).reshape(
            tq, num_heads * head_dim).astype(o_ref.dtype)


# ------------------------------ Pallas wrapper --------------------------------

def longformer_self_attention(hidden_states, w_qkv, b_qkv, *, num_heads, head_dim,
                              proj_block=256, q_block=256, kv_block=512):
    """hidden_states (B, S, E) f32, w_qkv (E, 3E) bf16, b_qkv (1, 3E) f32 -> (B, S, E)."""
    B, S, E = hidden_states.shape
    assert E == num_heads * head_dim
    ts = _tile_size(S, proj_block)
    tq = _tile_size(S, q_block)
    tkv = _tile_size(S, kv_block)

    # ---- Stage 1: fused QKV projection, tiled over S; head-major bf16 outputs ----
    qkv_shape = jax.ShapeDtypeStruct((B, num_heads, S, head_dim), jnp.bfloat16)
    hsd_spec = pl.BlockSpec((None, num_heads, ts, head_dim),
                            lambda b, si: (b, 0, si, 0))
    q, k, v = pl.pallas_call(
        functools.partial(_qkv_projection_kernel,
                          num_heads=num_heads, head_dim=head_dim),
        out_shape=(qkv_shape, qkv_shape, qkv_shape),
        grid=(B, S // ts),
        in_specs=[
            pl.BlockSpec((None, ts, E), lambda b, si: (b, si, 0)),   # activations tile
            pl.BlockSpec((E, 3 * E), lambda b, si: (0, 0)),          # fused qkv weight (bf16)
            pl.BlockSpec((1, 3 * E), lambda b, si: (0, 0)),          # fused qkv bias
        ],
        out_specs=(hsd_spec, hsd_spec, hsd_spec),
        compiler_params=pltpu.CompilerParams(
            dimension_semantics=("parallel", "parallel"),
            vmem_limit_bytes=_VMEM_LIMIT_BYTES),
    )(hidden_states, w_qkv, b_qkv)

    # ---- Stage 2: flash attention over (batch, Q blocks, KV blocks) ----
    out = pl.pallas_call(
        _flash_attention_kernel,
        out_shape=jax.ShapeDtypeStruct((B, S, E), hidden_states.dtype),
        grid=(B, S // tq, S // tkv),
        in_specs=[
            pl.BlockSpec((None, num_heads, tq, head_dim),
                         lambda b, qi, ki: (b, 0, qi, 0)),
            pl.BlockSpec((None, num_heads, tkv, head_dim),
                         lambda b, qi, ki: (b, 0, ki, 0)),
            pl.BlockSpec((None, num_heads, tkv, head_dim),
                         lambda b, qi, ki: (b, 0, ki, 0)),
        ],
        out_specs=pl.BlockSpec((None, tq, E), lambda b, qi, ki: (b, qi, 0)),
        scratch_shapes=[
            pltpu.VMEM((num_heads, tq, 1), jnp.float32),             # running max
            pltpu.VMEM((num_heads, tq, 1), jnp.float32),             # running denom
            pltpu.VMEM((num_heads, tq, head_dim), jnp.float32),      # running numerator
        ],
        compiler_params=pltpu.CompilerParams(
            dimension_semantics=("parallel", "parallel", "arbitrary"),
            vmem_limit_bytes=_VMEM_LIMIT_BYTES),
    )(q, k, v)
    return out


# ------------------------------ Module (JAX glue) ----------------------------

class Config:
    def __init__(self):
        self.hidden_size = 32
        self.num_attention_heads = 4
        self.attention_probs_dropout_prob = 0.0
        self.attention_window = [4]
        self.attention_dilation = [1]
        self.attention_mode = "sliding_chunks"
        self.autoregressive = False


class LongformerSelfAttentionPallas:
    def __init__(self, config, layer_id, key):
        assert config.hidden_size % config.num_attention_heads == 0
        self.num_heads = config.num_attention_heads
        self.head_dim = config.hidden_size // config.num_attention_heads
        self.embed_dim = config.hidden_size
        self.attention_window = config.attention_window[layer_id]
        self.attention_dilation = config.attention_dilation[layer_id]
        assert self.attention_window > 0 and self.attention_dilation > 0

        E = self.embed_dim
        ks = jax.random.split(key, 12)
        init = lambda k, shape: (jax.random.normal(k, shape, jnp.float32) * 0.02)
        # nn.Linear weights: (out_features, in_features), bias: (out_features,)
        self.wq, self.bq = init(ks[0], (E, E)), init(ks[1], (E,))
        self.wk, self.bk = init(ks[2], (E, E)), init(ks[3], (E,))
        self.wv, self.bv = init(ks[4], (E, E)), init(ks[5], (E,))
        # *_global projections exist in __init__ but are unused in forward.
        self.wq_g, self.bq_g = init(ks[6], (E, E)), init(ks[7], (E,))
        self.wk_g, self.bk_g = init(ks[8], (E, E)), init(ks[9], (E,))
        self.wv_g, self.bv_g = init(ks[10], (E, E)), init(ks[11], (E,))

        # Precompute the fused (E, 3E) qkv weight / (1, 3E) bias ONCE, with the
        # 1/sqrt(head_dim) scaling of q folded in. Weight stored bf16 (halves the
        # resident VMEM / HBM traffic); bias stays f32 and is added post-accumulation.
        scale = 1.0 / math.sqrt(self.head_dim)
        self.w_qkv = jnp.concatenate(
            [self.wq.T * scale, self.wk.T, self.wv.T], axis=1).astype(jnp.bfloat16)
        self.b_qkv = jnp.concatenate(
            [self.bq * scale, self.bk, self.bv])[None, :].astype(jnp.float32)

    def __call__(self, hidden_states, attention_mask=None):
        # TODO(synk): attention_mask (local/global/no-attention coding) is not supported.
        assert attention_mask is None
        B, S, E = hidden_states.shape
        assert E == self.embed_dim
        ctx = longformer_self_attention(
            hidden_states, self.w_qkv, self.b_qkv,
            num_heads=self.num_heads, head_dim=self.head_dim)
        return (ctx,)


# Pure-JAX f32 reference for verification.
def reference_forward(module, hidden_states):
    B, S, E = hidden_states.shape
    scale = 1.0 / math.sqrt(module.head_dim)
    q = (hidden_states @ module.wq.T + module.bq) * scale
    k = hidden_states @ module.wk.T + module.bk
    v = hidden_states @ module.wv.T + module.bv
    reshape = lambda t: t.reshape(B, S, module.num_heads, module.head_dim).transpose(0, 2, 1, 3)
    q, k, v = reshape(q), reshape(k), reshape(v)
    s = jnp.einsum("bhqd,bhkd->bhqk", q, k)
    p = jax.nn.softmax(s, axis=-1)
    ctx = jnp.einsum("bhqk,bhkd->bhqd", p, v)
    return ctx.transpose(0, 2, 1, 3).reshape(B, S, E)


if __name__ == "__main__":
    cfg = Config()
    key = jax.random.PRNGKey(0)
    k_param, k_input = jax.random.split(key)

    module = LongformerSelfAttentionPallas(cfg, layer_id=0, key=k_param)

    batch, seq_len = 2, 8
    hidden_states = jax.random.normal(k_input, (batch, seq_len, cfg.hidden_size),
                                      jnp.float32)

    (out,) = module(hidden_states)
    out = jax.block_until_ready(out)

    ref = reference_forward(module, hidden_states)
    assert out.shape == (batch, seq_len, cfg.hidden_size)
    # Tolerance accounts for bf16 MXU operands (weights / q / k / v / p) and the EUP
    # approximate reciprocal in the softmax normalization; accumulation is f32.
    assert jnp.allclose(out, ref, atol=1e-2, rtol=1e-2), "mismatch vs reference"

    print("KERNEL_OK")
</pallas_src>

<mosaic_0001>
module attributes {stable_mosaic.version = 11 : i64} {
  func.func @_qkv_projection_kernel(%arg0: i32, %arg1: i32, %arg2: memref<1x8x32xf32, #tpu.memory_space<vmem>>, %arg3: memref<32x96xbf16, #tpu.memory_space<vmem>>, %arg4: memref<1x96xf32, #tpu.memory_space<vmem>>, %arg5: memref<1x4x8x8xbf16, #tpu.memory_space<vmem>>, %arg6: memref<1x4x8x8xbf16, #tpu.memory_space<vmem>>, %arg7: memref<1x4x8x8xbf16, #tpu.memory_space<vmem>>) attributes {dimension_semantics = [#tpu.dimension_semantics<parallel>, #tpu.dimension_semantics<parallel>], iteration_bounds = array<i64: 2, 1>, scalar_prefetch = 0 : i64, scratch_operands = 0 : i64, tpu.core_type = #tpu.core_type<tc>, window_params = [{transform_indices = @transform_0, window_bounds = array<i64: 1, 8, 32>}, {pipeline_mode = #tpu.pipeline_mode<synchronous>, transform_indices = @transform_1, window_bounds = array<i64: 32, 96>}, {pipeline_mode = #tpu.pipeline_mode<synchronous>, transform_indices = @transform_2, window_bounds = array<i64: 1, 96>}, {transform_indices = @transform_3, window_bounds = array<i64: 1, 4, 8, 8>}, {transform_indices = @transform_4, window_bounds = array<i64: 1, 4, 8, 8>}, {transform_indices = @transform_5, window_bounds = array<i64: 1, 4, 8, 8>}]} {
    %c0 = arith.constant 0 : index
    %c0_0 = arith.constant 0 : index
    %c0_1 = arith.constant 0 : index
    %0 = vector.load %arg2[%c0, %c0_0, %c0_1] : memref<1x8x32xf32, #tpu.memory_space<vmem>>, vector<1x8x32xf32>
    %1 = vector.shape_cast %0 : vector<1x8x32xf32> to vector<8x32xf32>
    %2 = arith.truncf %1 : vector<8x32xf32> to vector<8x32xbf16>
    %c0_2 = arith.constant 0 : index
    %c0_3 = arith.constant 0 : index
    %3 = vector.load %arg3[%c0_2, %c0_3] : memref<32x96xbf16, #tpu.memory_space<vmem>>, vector<32x96xbf16>
    %cst = arith.constant dense<0.000000e+00> : vector<8x96xf32>
    %4 = tpu.matmul %2, %3, %cst {dimension_numbers = #tpu.dot_dimension_numbers<[1], [0], [0], [1], [0, 0, 1, 1], [], []>} : vector<8x32xbf16>, vector<32x96xbf16>, vector<8x96xf32> -> vector<8x96xf32>
    %c0_4 = arith.constant 0 : index
    %c0_5 = arith.constant 0 : index
    %5 = vector.load %arg4[%c0_4, %c0_5] : memref<1x96xf32, #tpu.memory_space<vmem>>, vector<1x96xf32>
    %6 = vector.broadcast %5 : vector<1x96xf32> to vector<8x96xf32>
    %7 = arith.addf %4, %6 : vector<8x96xf32>
    %8 = vector.extract_strided_slice %7 {offsets = [0, 0], sizes = [8, 32], strides = [1, 1]} : vector<8x96xf32> to vector<8x32xf32>
    %9 = vector.shape_cast %8 : vector<8x32xf32> to vector<8x4x8xf32>
    %10 = tpu.transpose %9, [1, 0, 2] : vector<8x4x8xf32> -> vector<4x8x8xf32>
    %11 = arith.truncf %10 : vector<4x8x8xf32> to vector<4x8x8xbf16>
    %c0_6 = arith.constant 0 : index
    %c0_7 = arith.constant 0 : index
    %c0_8 = arith.constant 0 : index
    %c0_9 = arith.constant 0 : index
    %12 = vector.load %arg5[%c0_6, %c0_7, %c0_8, %c0_9] : memref<1x4x8x8xbf16, #tpu.memory_space<vmem>>, vector<1x4x8x8xbf16>
    %13 = vector.shape_cast %12 : vector<1x4x8x8xbf16> to vector<4x8x8xbf16>
    %14 = vector.shape_cast %11 : vector<4x8x8xbf16> to vector<1x4x8x8xbf16>
    tpu.vector_store %arg5[%c0_6, %c0_7, %c0_8, %c0_9], %14 {strides = array<i32>} : memref<1x4x8x8xbf16, #tpu.memory_space<vmem>>, vector<1x4x8x8xbf16>,
    %15 = vector.extract_strided_slice %7 {offsets = [0, 32], sizes = [8, 32], strides = [1, 1]} : vector<8x96xf32> to vector<8x32xf32>
    %16 = vector.shape_cast %15 : vector<8x32xf32> to vector<8x4x8xf32>
    %17 = tpu.transpose %16, [1, 0, 2] : vector<8x4x8xf32> -> vector<4x8x8xf32>
    %18 = arith.truncf %17 : vector<4x8x8xf32> to vector<4x8x8xbf16>
    %c0_10 = arith.constant 0 : index
    %c0_11 = arith.constant 0 : index
    %c0_12 = arith.constant 0 : index
    %c0_13 = arith.constant 0 : index
    %19 = vector.load %arg6[%c0_10, %c0_11, %c0_12, %c0_13] : memref<1x4x8x8xbf16, #tpu.memory_space<vmem>>, vector<1x4x8x8xbf16>
    %20 = vector.shape_cast %19 : vector<1x4x8x8xbf16> to vector<4x8x8xbf16>
    %21 = vector.shape_cast %18 : vector<4x8x8xbf16> to vector<1x4x8x8xbf16>
    tpu.vector_store %arg6[%c0_10, %c0_11, %c0_12, %c0_13], %21 {strides = array<i32>} : memref<1x4x8x8xbf16, #tpu.memory_space<vmem>>, vector<1x4x8x8xbf16>,
    %22 = vector.extract_strided_slice %7 {offsets = [0, 64], sizes = [8, 32], strides = [1, 1]} : vector<8x96xf32> to vector<8x32xf32>
    %23 = vector.shape_cast %22 : vector<8x32xf32> to vector<8x4x8xf32>
    %24 = tpu.transpose %23, [1, 0, 2] : vector<8x4x8xf32> -> vector<4x8x8xf32>
    %25 = arith.truncf %24 : vector<4x8x8xf32> to vector<4x8x8xbf16>
    %c0_14 = arith.constant 0 : index
    %c0_15 = arith.constant 0 : index
    %c0_16 = arith.constant 0 : index
    %c0_17 = arith.constant 0 : index
    %26 = vector.load %arg7[%c0_14, %c0_15, %c0_16, %c0_17] : memref<1x4x8x8xbf16, #tpu.memory_space<vmem>>, vector<1x4x8x8xbf16>
    %27 = vector.shape_cast %26 : vector<1x4x8x8xbf16> to vector<4x8x8xbf16>
    %28 = vector.shape_cast %25 : vector<4x8x8xbf16> to vector<1x4x8x8xbf16>
    tpu.vector_store %arg7[%c0_14, %c0_15, %c0_16, %c0_17], %28 {strides = array<i32>} : memref<1x4x8x8xbf16, #tpu.memory_space<vmem>>, vector<1x4x8x8xbf16>,
    return
  }
  func.func @transform_0(%arg0: i32, %arg1: i32) -> (i32, i32, i32) {
    %c0_i32 = arith.constant 0 : i32
    %c0_i32_0 = arith.constant 0 : i32
    return %arg0, %arg1, %c0_i32 : i32, i32, i32
  }
  func.func @transform_1(%arg0: i32, %arg1: i32) -> (i32, i32) {
    %c0_i32 = arith.constant 0 : i32
    %c0_i32_0 = arith.constant 0 : i32
    %c0_i32_1 = arith.constant 0 : i32
    return %c0_i32, %c0_i32_0 : i32, i32
  }
  func.func @transform_2(%arg0: i32, %arg1: i32) -> (i32, i32) {
    %c0_i32 = arith.constant 0 : i32
    %c0_i32_0 = arith.constant 0 : i32
    %c0_i32_1 = arith.constant 0 : i32
    return %c0_i32, %c0_i32_0 : i32, i32
  }
  func.func @transform_3(%arg0: i32, %arg1: i32) -> (i32, i32, i32, i32) {
    %c0_i32 = arith.constant 0 : i32
    %c0_i32_0 = arith.constant 0 : i32
    %c0_i32_1 = arith.constant 0 : i32
    return %arg0, %c0_i32, %arg1, %c0_i32_0 : i32, i32, i32, i32
  }
  func.func @transform_4(%arg0: i32, %arg1: i32) -> (i32, i32, i32, i32) {
    %c0_i32 = arith.constant 0 : i32
    %c0_i32_0 = arith.constant 0 : i32
    %c0_i32_1 = arith.constant 0 : i32
    return %arg0, %c0_i32, %arg1, %c0_i32_0 : i32, i32, i32, i32
  }
  func.func @transform_5(%arg0: i32, %arg1: i32) -> (i32, i32, i32, i32) {
    %c0_i32 = arith.constant 0 : i32
    %c0_i32_0 = arith.constant 0 : i32
    %c0_i32_1 = arith.constant 0 : i32
    return %arg0, %c0_i32, %arg1, %c0_i32_0 : i32, i32, i32, i32
  }
}

</mosaic_0001>

<llo_original>
// kernel: tpu_custom_call.1
$region0: #{tpu_custom_call.1}
  #allocation0 [shape = 'u32[]', space=smem, size = 0x4, offset = 0x4, fixed_abs, tag = 'smem constant byte address 0x4 - core index']
  #allocation1 [shape = 'u32[144,128]{1,0:T(1,128)}', space=vmem, size = 0x12000, scoped, tag = 'internal scratch']
  %s0 = inlined_call_operand.hbm [shape: f32[2,8,32], index: 0, kind: input, shape index: {}]
  %s1 = inlined_call_operand.hbm [shape: bf16[32,96], index: 1, kind: input, shape index: {}]
  %s2 = inlined_call_operand.vmem [shape: f32[1,96], index: 2, kind: input, shape index: {}]
  %s3 = inlined_call_operand.hbm [shape: bf16[2,4,8,8], index: 3, kind: output, shape index: {0}]
  %s4 = inlined_call_operand.hbm [shape: bf16[2,4,8,8], index: 4, kind: output, shape index: {1}]
  %s5 = inlined_call_operand.hbm [shape: bf16[2,4,8,8], index: 5, kind: output, shape index: {2}]
  %6 = xla_tuple %s3, %s4, %s5
  %s7 = sld [smem:[#allocation0]]
  $region69: #{tpu_custom_call.1} parent=0
    _
  %s9 = ssub.s32 1, %s7
  %s10 = scalar_select 0, %s9, %s7
  $region1: #{tpu_custom_call.1} parent=0
    #allocation2 [shape = 'u8[8192]{0}', space=vmem, size = 0x2000, scoped, tag = 'input window, operand 0']
    #allocation3 [shape = 's32[2]{0}', space=sflag, size = 0x8, scoped, tag = 'scoped memory for tpu_custom_call.1']
    #allocation4 [shape = 's32[2]{0}', space=sflag, size = 0x8, scoped, tag = 'scoped memory for tpu_custom_call.1']
    #allocation5 [shape = 'u8[8192]{0}', space=vmem, size = 0x2000, scoped, tag = 'input window, operand 1, single buffered']
    #allocation6 [shape = 's32[1]{0}', space=sflag, size = 0x4, scoped, tag = 'scoped memory for tpu_custom_call.1']
    #allocation7 [shape = 'u8[16384]{0}', space=vmem, size = 0x4000, scoped, tag = 'output window, operand 0']
    #allocation8 [shape = 'u8[16384]{0}', space=vmem, size = 0x4000, scoped, tag = 'output window, operand 1']
    #allocation9 [shape = 's32[2]{0}', space=sflag, size = 0x8, scoped, tag = 'scoped memory for tpu_custom_call.1']
    #allocation10 [shape = 'u8[16384]{0}', space=vmem, size = 0x4000, scoped, tag = 'output window, operand 2']
    %11 = vsyncpa [#allocation3], 0
    %s12 = scalar_lea.sflag [#allocation3], 1
    %13 = vsyncpa %s12, 0
    %14 = vsyncpa [#allocation6], 0
    %15 = vsyncpa [#allocation4], 0
    %s16 = scalar_lea.sflag [#allocation4], 1
    %17 = vsyncpa %s16, 0
    %18 = vsyncpa [#allocation9], 0
    %s19 = scalar_lea.sflag [#allocation9], 1
    %20 = vsyncpa %s19, 0
    loop: start=0, step=1, limit=4
    $region2: #{tpu_custom_call.1} parent=1 // loop_pre_header
      _
    $region3: #{tpu_custom_call.1} parent=1 // loop_header
      %s22 = sphi 0, %s26
      %p23 = scmp.ge.s32.totalorder %s22, 4
      %s29 = sphi 0, %s41
      %s30 = sphi 0, %s37
      %s31 = sphi 0, %s29
      %s32 = sphi 0, %s30
      %s33 = sphi 0, %s31
      %s34 = sphi 0, %s32
      %s46 = sphi 0, %s48
      %s49 = sphi 0, %s46
      %s50 = sphi 0, %s49
      %s66 = sphi 0, %s50
      %s70 = sphi 0, %s70
      %s72 = sphi 0, %s70
      %s73 = sphi 0, %s72
      %s87 = sphi 0, %s73
      %s91 = sphi 0, %s91
      %s93 = sphi 0, %s91
      %s94 = sphi 0, %s93
      %s108 = sphi 0, %s94
      %s116 = sphi 0, %s118
      %s119 = sphi 0, %s116
      %s120 = sphi 0, %s119
      %s136 = sphi 0, %s120
      %s144 = sphi 0, %s146
      %s147 = sphi 0, %s144
      %s148 = sphi 0, %s147
      %s164 = sphi 0, %s148
      %s172 = sphi 0, %s174
      %s175 = sphi 0, %s172
      %s176 = sphi 0, %s175
      %s192 = sphi 0, %s176
    $region4: #{tpu_custom_call.1} parent=1 // loop_header_branch
      %25 = sbr.rel (%p23) target = $region8
    $region5: #{tpu_custom_call.1} parent=1 // loop_body
      %s27 = ssub.s32 %s22, 1
      %s28 = ssub.s32 %s22, 2
      %s35 = sadd.s32 1, %s30
      %p36 = scmp.ge.s32.totalorder %s35, 1
      %s37 = scalar_select %p36, 0, %s35
      %s38 = sadd.s32 1, %s29
      %s39 = scalar_select %p36, %s38, %s29
      %p40 = scmp.ge.s32.totalorder %s39, 2
      %s41 = scalar_select %p40, 0, %s39
      %s42 = ssub.s32 %s29, %s41
      %s43 = ssub.s32 %s30, %s37
      %s44 = sor.u32 %s42, %s43
      %p45 = scmp.eq.s32.totalorder %s44, 0
      %s47 = sadd.s32 %s46, 1
      %s48 = scalar_select %p45, %s46, %s47
      %p51 = pneg %p45
      %p52 = scmp.eq.s32.totalorder %s22, 1
      %p53 = por %p51, %p52
      %p54 = scmp.ne.s32.totalorder %s46, %s49
      %p55 = scmp.eq.s32.totalorder %s22, 0
      %p56 = por %p54, %p55
      %p57 = scmp.ne.s32.totalorder %s46, %s49
      %p58 = scmp.eq.s32.totalorder %s27, 1
      %p59 = por %p57, %p58
      %p60 = scmp.ne.s32.totalorder %s49, %s50
      %p61 = scmp.eq.s32.totalorder %s27, 0
      %p62 = por %p60, %p61
      %p63 = scmp.ne.s32.totalorder %s49, %s50
      %p64 = scmp.eq.s32.totalorder %s28, 1
      %p65 = por %p63, %p64
      %p67 = scmp.ne.s32.totalorder %s50, %s66
      %p68 = scmp.eq.s32.totalorder %s28, 0
      %p69 = por %p67, %p68
      %s71 = sadd.s32 %s70, 1
      %p74 = scmp.eq.s32.totalorder %s22, 1
      %p75 = scmp.ne.s32.totalorder %s70, %s72
      %p76 = scmp.eq.s32.totalorder %s22, 0
      %p77 = por %p75, %p76
      %p78 = scmp.ne.s32.totalorder %s70, %s72
      %p79 = scmp.eq.s32.totalorder %s27, 1
      %p80 = por %p78, %p79
      %p81 = scmp.ne.s32.totalorder %s72, %s73
      %p82 = scmp.eq.s32.totalorder %s27, 0
      %p83 = por %p81, %p82
      %p84 = scmp.ne.s32.totalorder %s72, %s73
      %p85 = scmp.eq.s32.totalorder %s28, 1
      %p86 = por %p84, %p85
      %p88 = scmp.ne.s32.totalorder %s73, %s87
      %p89 = scmp.eq.s32.totalorder %s28, 0
      %p90 = por %p88, %p89
      %s92 = sadd.s32 %s91, 1
      %p95 = scmp.eq.s32.totalorder %s22, 1
      %p96 = scmp.ne.s32.totalorder %s91, %s93
      %p97 = scmp.eq.s32.totalorder %s22, 0
      %p98 = por %p96, %p97
      %p99 = scmp.ne.s32.totalorder %s91, %s93
      %p100 = scmp.eq.s32.totalorder %s27, 1
      %p101 = por %p99, %p100
      %p102 = scmp.ne.s32.totalorder %s93, %s94
      %p103 = scmp.eq.s32.totalorder %s27, 0
      %p104 = por %p102, %p103
      %p105 = scmp.ne.s32.totalorder %s93, %s94
      %p106 = scmp.eq.s32.totalorder %s28, 1
      %p107 = por %p105, %p106
      %p109 = scmp.ne.s32.totalorder %s94, %s108
      %p110 = scmp.eq.s32.totalorder %s28, 0
      %p111 = por %p109, %p110
      %s112 = ssub.s32 %s29, %s41
      %s113 = ssub.s32 %s30, %s37
      %s114 = sor.u32 %s112, %s113
      %p115 = scmp.eq.s32.totalorder %s114, 0
      %s117 = sadd.s32 %s116, 1
      %s118 = scalar_select %p115, %s116, %s117
      %p121 = pneg %p115
      %p122 = scmp.eq.s32.totalorder %s22, 1
      %p123 = por %p121, %p122
      %p124 = scmp.ne.s32.totalorder %s116, %s119
      %p125 = scmp.eq.s32.totalorder %s22, 0
      %p126 = por %p124, %p125
      %p127 = scmp.ne.s32.totalorder %s116, %s119
      %p128 = scmp.eq.s32.totalorder %s27, 1
      %p129 = por %p127, %p128
      %p130 = scmp.ne.s32.totalorder %s119, %s120
      %p131 = scmp.eq.s32.totalorder %s27, 0
      %p132 = por %p130, %p131
      %p133 = scmp.ne.s32.totalorder %s119, %s120
      %p134 = scmp.eq.s32.totalorder %s28, 1
      %p135 = por %p133, %p134
      %p137 = scmp.ne.s32.totalorder %s120, %s136
      %p138 = scmp.eq.s32.totalorder %s28, 0
      %p139 = por %p137, %p138
      %s140 = ssub.s32 %s29, %s41
      %s141 = ssub.s32 %s30, %s37
      %s142 = sor.u32 %s140, %s141
      %p143 = scmp.eq.s32.totalorder %s142, 0
      %s145 = sadd.s32 %s144, 1
      %s146 = scalar_select %p143, %s144, %s145
      %p149 = pneg %p143
      %p150 = scmp.eq.s32.totalorder %s22, 1
      %p151 = por %p149, %p150
      %p152 = scmp.ne.s32.totalorder %s144, %s147
      %p153 = scmp.eq.s32.totalorder %s22, 0
      %p154 = por %p152, %p153
      %p155 = scmp.ne.s32.totalorder %s144, %s147
      %p156 = scmp.eq.s32.totalorder %s27, 1
      %p157 = por %p155, %p156
      %p158 = scmp.ne.s32.totalorder %s147, %s148
      %p159 = scmp.eq.s32.totalorder %s27, 0
      %p160 = por %p158, %p159
      %p161 = scmp.ne.s32.totalorder %s147, %s148
      %p162 = scmp.eq.s32.totalorder %s28, 1
      %p163 = por %p161, %p162
      %p165 = scmp.ne.s32.totalorder %s148, %s164
      %p166 = scmp.eq.s32.totalorder %s28, 0
      %p167 = por %p165, %p166
      %s168 = ssub.s32 %s29, %s41
      %s169 = ssub.s32 %s30, %s37
      %s170 = sor.u32 %s168, %s169
      %p171 = scmp.eq.s32.totalorder %s170, 0
      %s173 = sadd.s32 %s172, 1
      %s174 = scalar_select %p171, %s172, %s173
      %p177 = pneg %p171
      %p178 = scmp.eq.s32.totalorder %s22, 1
      %p179 = por %p177, %p178
      %p180 = scmp.ne.s32.totalorder %s172, %s175
      %p181 = scmp.eq.s32.totalorder %s22, 0
      %p182 = por %p180, %p181
      %p183 = scmp.ne.s32.totalorder %s172, %s175
      %p184 = scmp.eq.s32.totalorder %s27, 1
      %p185 = por %p183, %p184
      %p186 = scmp.ne.s32.totalorder %s175, %s176
      %p187 = scmp.eq.s32.totalorder %s27, 0
      %p188 = por %p186, %p187
      %p189 = scmp.ne.s32.totalorder %s175, %s176
      %p190 = scmp.eq.s32.totalorder %s28, 1
      %p191 = por %p189, %p190
      %p193 = scmp.ne.s32.totalorder %s176, %s192
      %p194 = scmp.eq.s32.totalorder %s28, 0
      %p195 = por %p193, %p194
      %p196 = scmp.le.s32.totalorder 1, %s22
      %p197 = scmp.lt.s32.totalorder %s22, 3
      %p198 = pnand %p196, %p197
      %p199 = pneg %p198
      // Predicated region
      $region9: #{tpu_custom_call.1} parent=5 // pred_check
        _
      $region10: #{tpu_custom_call.1} parent=5 // pred_check_branch
        %201 = sbr.rel (%p198) target = $region12
      $region11: #{tpu_custom_call.1} parent=5 // pred_region
        %s202 = ssub.s32 %s22, 1
        // Predicated region
        $region13: #{tpu_custom_call.1} parent=11 // pred_check
          %p203 = pneg %p83
        $region14: #{tpu_custom_call.1} parent=11 // pred_check_branch
          %205 = sbr.rel (%p203) target = $region16
        $region15: #{tpu_custom_call.1} parent=11 // pred_region
          %s207 = ssub.s32 256, 256
          %208 = vsyncadd [#allocation6], %s207
          %s209 = sshll.u32 [#allocation5], 4
          %s210 = int_to_ptr.vmem [resolvable:$true] %s209
          %215 = dma.hbm_to_vmem [thread:$0]  %s1, 256, %s210, [#allocation6], 64, 64, 4
        $region16: #{tpu_custom_call.1} parent=11 // pred_fallthru
          _
        // Predicated region
        $region17: #{tpu_custom_call.1} parent=11 // pred_check
          %p216 = pneg %p104
        $region18: #{tpu_custom_call.1} parent=11 // pred_check_branch
          %218 = sbr.rel (%p216) target = $region20
        $region19: #{tpu_custom_call.1} parent=11 // pred_region
          _
        $region20: #{tpu_custom_call.1} parent=11 // pred_fallthru
          _
      $region12: #{tpu_custom_call.1} parent=5 // pred_fallthru
        _
      %p219 = scmp.lt.s32.totalorder %s22, 2
      // Predicated region
      $region21: #{tpu_custom_call.1} parent=5 // pred_check
        %p220 = pneg %p219
      $region22: #{tpu_custom_call.1} parent=5 // pred_check_branch
        %222 = sbr.rel (%p220) target = $region24
      $region23: #{tpu_custom_call.1} parent=5 // pred_region
        // Predicated region
        $region25: #{tpu_custom_call.1} parent=23 // pred_check
          %p223 = pneg %p56
        $region26: #{tpu_custom_call.1} parent=23 // pred_check_branch
          %225 = sbr.rel (%p223) target = $region28
        $region27: #{tpu_custom_call.1} parent=23 // pred_region
          %s226 = sand.u32 %s46, 1
          %s227 = scalar_lea.sflag [#allocation3], %s226
          %s228 = sand.u32 %s46, 1
          %s229 = smul.addr %s228, 8
          %s230 = scalar_lea.vmem [#allocation2], %s229
          %s232 = ssub.s32 128, 128
          %233 = vsyncadd %s227, %s232
          %s234 = sadd.s32 %s30, %s29
          %s235 = smul.addr %s234, 128
          %s236 = scalar_lea.hbm %s0, %s235
          %s238 = sshll.u32 %s230, 4
          %s239 = int_to_ptr.vmem [resolvable:$true] %s238
          %241 = dma.hbm_to_vmem [thread:$0]  %s236, 128, %s239, %s227
        $region28: #{tpu_custom_call.1} parent=23 // pred_fallthru
          _
      $region24: #{tpu_custom_call.1} parent=5 // pred_fallthru
        _
      %p242 = scmp.le.s32.totalorder 1, %s22
      %p243 = scmp.lt.s32.totalorder %s22, 3
      %p244 = pnand %p242, %p243
      %p245 = pneg %p244
      // Predicated region
      $region29: #{tpu_custom_call.1} parent=5 // pred_check
        _
      $region30: #{tpu_custom_call.1} parent=5 // pred_check_branch
        %247 = sbr.rel (%p244) target = $region32
      $region31: #{tpu_custom_call.1} parent=5 // pred_region
        %s248 = ssub.s32 %s22, 1
        %s249 = sand.u32 %s49, 1
        %s250 = scalar_lea.sflag [#allocation3], %s249
        %s251 = sand.u32 %s49, 1
        %s252 = smul.addr %s251, 8
        %s253 = scalar_lea.vmem [#allocation2], %s252
        // Predicated region
        $region33: #{tpu_custom_call.1} parent=31 // pred_check
          %p254 = pneg %p62
        $region34: #{tpu_custom_call.1} parent=31 // pred_check_branch
          %256 = sbr.rel (%p254) target = $region36
        $region35: #{tpu_custom_call.1} parent=31 // pred_region
          %257 = dma.done %s250, 128
        $region36: #{tpu_custom_call.1} parent=31 // pred_fallthru
          _
        // Predicated region
        $region37: #{tpu_custom_call.1} parent=31 // pred_check
          %p258 = pneg %p83
        $region38: #{tpu_custom_call.1} parent=31 // pred_check_branch
          %260 = sbr.rel (%p258) target = $region40
        $region39: #{tpu_custom_call.1} parent=31 // pred_region
          %261 = dma.done [#allocation6], 256
        $region40: #{tpu_custom_call.1} parent=31 // pred_fallthru
          _
        %s262 = sand.u32 %s49, 1
        %s263 = scalar_lea.sflag [#allocation3], %s262
        %s264 = sand.u32 %s49, 1
        %s265 = smul.addr %s264, 8
        %s266 = scalar_lea.vmem [#allocation2], %s265
        %p267 = pneg %p62
        %p268 = pneg %p59
        %p269 = pneg %p83
        %p270 = pneg %p80
        %p271 = pneg %p104
        %p272 = pneg %p101
        %p273 = pneg %p132
        %p274 = pneg %p129
        %s275 = sand.u32 %s119, 1
        %s276 = scalar_lea.sflag [#allocation4], %s275
        %s277 = sand.u32 %s119, 1
        %s278 = smul.addr %s277, 16
        %s279 = scalar_lea.vmem [#allocation7], %s278
        %p280 = pneg %p160
        %p281 = pneg %p157
        %s282 = sand.u32 %s27, 1
        %s283 = scalar_lea.sflag [#allocation9], %s282
        %s284 = sand.u32 %s147, 1
        %s285 = smul.addr %s284, 16
        %s286 = scalar_lea.vmem [#allocation8], %s285
        %p287 = pneg %p188
        %p288 = pneg %p185
        %s289 = sand.u32 %s27, 1
        %s290 = scalar_lea.sflag [#allocation9], %s289
        %s291 = sand.u32 %s175, 1
        %s292 = smul.addr %s291, 16
        %s293 = scalar_lea.vmem [#allocation10], %s292
        %v295 = vld [vmem:[%s253] sm:$0xff]
        %v296 = vpack.c.bf16 %v295, %v295
        %v297 = vld [vmem:[#allocation5] sm:$0xf]
        %v298 = vld [vmem:[#allocation5 + $0x4] sm:$0xf]
        %v299 = vld [vmem:[#allocation5 + $0x8] sm:$0xf]
        %v300 = vld [vmem:[#allocation5 + $0xc] sm:$0xf]
        %v301 = vld [vmem:[%s2] sm:$0x1]
        %v303 = vlaneseq
        %v304 = vshrl.u32 %v303, 7
        %v305 = vsub.s32 0, %v304
        %v306 = vrot.slane %v301, %v305
        %v312 = vunpack.c.l.b16 %v297
        %v313 = vunpack.c.l.b16 %v298
        %v314 = vunpack.c.l.b16 %v299
        %v315 = vunpack.c.l.b16 %v300
        %v316 = vpack.c.b16 %v313, %v312
        %v317 = vpack.c.b16 %v315, %v314
        %vm320 = vcmask 261120
        %v322 = vsel %vm320, %v296, 0
        %324 = vmatprep.subr.bf16.mxu0 0
        %325 = vmatpush1.bf16.msra.mxu0 %v316
        %326 = vmatprep.subr.bf16.mxu0 0
        %327 = vmatpush1.bf16.msra.mxu0 %v317
        %328 = vmatprep.subr.bf16.mxu0 0
        %329 = vmatpush1.bf16.msra.mxu0 0
        %330 = vmatprep.subr.bf16.mxu0 0
        %331 = vmatpush1.bf16.msra.mxu0 0
        %332 = vmatprep.subr.bf16.mxu0 0
        %333 = vmatpush1.bf16.msra.mxu0 0
        %334 = vmatprep.subr.bf16.mxu0 0
        %335 = vmatpush1.bf16.msra.mxu0 0
        %336 = vmatprep.subr.bf16.mxu0 0
        %337 = vmatpush1.bf16.msra.mxu0 0
        %338 = vmatprep.subr.bf16.mxu0 0
        %339 = vmatpush1.bf16.msra.mxu0 0
        %340 = vmatprep.subr.bf16.mxu0 0
        %341 = vmatpush1.bf16.msra.mxu0 0
        %342 = vmatprep.subr.bf16.mxu0 0
        %343 = vmatpush1.bf16.msra.mxu0 0
        %344 = vmatprep.subr.bf16.mxu0 0
        %345 = vmatpush1.bf16.msra.mxu0 0
        %346 = vmatprep.subr.bf16.mxu0 0
        %347 = vmatpush1.bf16.msra.mxu0 0
        %348 = vmatprep.subr.bf16.mxu0 0
        %349 = vmatpush1.bf16.msra.mxu0 0
        %350 = vmatprep.subr.bf16.mxu0 0
        %351 = vmatpush1.bf16.msra.mxu0 0
        %352 = vmatprep.subr.bf16.mxu0 0
        %353 = vmatpush1.bf16.msra.mxu0 0
        %354 = vmatprep.subr.bf16.mxu0 0
        %355 = vmatpush1.bf16.msra.mxu0 0
        %356 = vmatprep.mubr.bf16.mxu0 0
        %357 = vmatmul.mubr.bf16.gmra.mrb[0].mxu0 %v322
        %v358 = vpop.f32.mrb[0].mxu0
        %v359 = vadd.f32 %v306, %v358
        %v360 = vpop.f32.mrb[0].mxu0
        %v361 = vpop.f32.mrb[0].mxu0
        %v362 = vpop.f32.mrb[0].mxu0
        %363 = vdwg.mxu0
        %365 = vrot.lane.b32.xlu0 %v359, 120
        %v366 = vpop.permute.xlu0 %365
        %368 = vrot.lane.b32.xlu0 %v359, 112
        %v369 = vpop.permute.xlu0 %368
        %371 = vrot.lane.b32.xlu0 %v359, 104
        %v372 = vpop.permute.xlu0 %371
        %v374 = vcombine.low %v359, %v369
        %v375 = vcombine.high %v359, %v369
        %v377 = vunpack.c.l.s4 1983009808
        %v378 = vunpack.c.0.s8 %v377
        %v379 = vlaneseq
        %v380 = vshrl.u32 %v379, 7
        %v381 = vsub.s32 %v378, %v380
        %v382 = vrot.slane %v374, %v381
        %v384 = vunpack.c.l.s4 1983009808
        %v385 = vunpack.c.0.s8 %v384
        %v386 = vlaneseq
        %v387 = vshrl.u32 %v386, 7
        %v388 = vsub.s32 %v385, %v387
        %v389 = vrot.slane %v375, %v388
        %v390 = vcombine.low %v366, %v372
        %v391 = vcombine.high %v366, %v372
        %v393 = vunpack.c.l.s4 1983009808
        %v394 = vunpack.c.0.s8 %v393
        %v395 = vlaneseq
        %v396 = vshrl.u32 %v395, 7
        %v397 = vsub.s32 %v394, %v396
        %v398 = vrot.slane %v390, %v397
        %v400 = vunpack.c.l.s4 1983009808
        %v401 = vunpack.c.0.s8 %v400
        %v402 = vlaneseq
        %v403 = vshrl.u32 %v402, 7
        %v404 = vsub.s32 %v401, %v403
        %v405 = vrot.slane %v391, %v404
        %v406 = vcombine.low %v382, %v398
        %v407 = vcombine.high %v382, %v398
        %v409 = vunpack.c.l.s4 1934713408
        %v410 = vunpack.c.0.s8 %v409
        %v411 = vlaneseq
        %v412 = vshrl.u32 %v411, 7
        %v413 = vsub.s32 %v410, %v412
        %v414 = vrot.slane %v406, %v413
        %v416 = vunpack.c.l.s4 1934713408
        %v417 = vunpack.c.0.s8 %v416
        %v418 = vlaneseq
        %v419 = vshrl.u32 %v418, 7
        %v420 = vsub.s32 %v417, %v419
        %v421 = vrot.slane %v407, %v420
        %v422 = vcombine.low %v389, %v405
        %v423 = vcombine.high %v389, %v405
        %v425 = vunpack.c.l.s4 1934713408
        %v426 = vunpack.c.0.s8 %v425
        %v427 = vlaneseq
        %v428 = vshrl.u32 %v427, 7
        %v429 = vsub.s32 %v426, %v428
        %v430 = vrot.slane %v422, %v429
        %v432 = vunpack.c.l.s4 1934713408
        %v433 = vunpack.c.0.s8 %v432
        %v434 = vlaneseq
        %v435 = vshrl.u32 %v434, 7
        %v436 = vsub.s32 %v433, %v435
        %v437 = vrot.slane %v423, %v436
        %v438 = vcombine.high %v414, 0.0
        %v439 = vcombine.high %v421, 0.0
        %v440 = vcombine.high %v430, 0.0
        %v441 = vcombine.high %v437, 0.0
        %v442 = vcombine.low %v414, %v421
        %v444 = vunpack.c.l.s4 1983009808
        %v445 = vunpack.c.0.s8 %v444
        %v446 = vlaneseq
        %v447 = vshrl.u32 %v446, 7
        %v448 = vsub.s32 %v445, %v447
        %v449 = vrot.slane %v442, %v448
        %v450 = vcombine.low %v438, %v439
        %v452 = vunpack.c.l.s4 1983009808
        %v453 = vunpack.c.0.s8 %v452
        %v454 = vlaneseq
        %v455 = vshrl.u32 %v454, 7
        %v456 = vsub.s32 %v453, %v455
        %v457 = vrot.slane %v450, %v456
        %v458 = vcombine.low %v430, %v437
        %v460 = vunpack.c.l.s4 1983009808
        %v461 = vunpack.c.0.s8 %v460
        %v462 = vlaneseq
        %v463 = vshrl.u32 %v462, 7
        %v464 = vsub.s32 %v461, %v463
        %v465 = vrot.slane %v458, %v464
        %v466 = vcombine.low %v440, %v441
        %v468 = vunpack.c.l.s4 1983009808
        %v469 = vunpack.c.0.s8 %v468
        %v470 = vlaneseq
        %v471 = vshrl.u32 %v470, 7
        %v472 = vsub.s32 %v469, %v471
        %v473 = vrot.slane %v466, %v472
        %v474 = vcombine.low %v449, %v457
        %v475 = vcombine.high %v449, %v457
        %v477 = vunpack.c.l.s4 1934713408
        %v478 = vunpack.c.0.s8 %v477
        %v479 = vlaneseq
        %v480 = vshrl.u32 %v479, 7
        %v481 = vsub.s32 %v478, %v480
        %v482 = vrot.slane %v474, %v481
        %v484 = vunpack.c.l.s4 1934713408
        %v485 = vunpack.c.0.s8 %v484
        %v486 = vlaneseq
        %v487 = vshrl.u32 %v486, 7
        %v488 = vsub.s32 %v485, %v487
        %v489 = vrot.slane %v475, %v488
        %v490 = vcombine.low %v465, %v473
        %v491 = vcombine.high %v465, %v473
        %v493 = vunpack.c.l.s4 1934713408
        %v494 = vunpack.c.0.s8 %v493
        %v495 = vlaneseq
        %v496 = vshrl.u32 %v495, 7
        %v497 = vsub.s32 %v494, %v496
        %v498 = vrot.slane %v490, %v497
        %v500 = vunpack.c.l.s4 1934713408
        %v501 = vunpack.c.0.s8 %v500
        %v502 = vlaneseq
        %v503 = vshrl.u32 %v502, 7
        %v504 = vsub.s32 %v501, %v503
        %v505 = vrot.slane %v491, %v504
        %v506 = vcombine.low %v482, %v498
        %v507 = vcombine.high %v482, %v498
        %v508 = vcombine.low %v489, %v505
        %v509 = vcombine.high %v489, %v505
        %v510 = vpack.c.bf16 %v506, %v506
        %v511 = vpack.c.bf16 %v507, %v507
        %v512 = vpack.c.bf16 %v508, %v508
        %v513 = vpack.c.bf16 %v509, %v509
        %vm514 = vcmask 60416
        %515 = vst.msk [vmem:[%s279] sm:$0xf] %vm514, %v510
        %516 = vst.msk [vmem:[%s279 + $0x4] sm:$0xf] %vm514, %v511
        %517 = vst.msk [vmem:[%s279 + $0x8] sm:$0xf] %vm514, %v512
        %518 = vst.msk [vmem:[%s279 + $0xc] sm:$0xf] %vm514, %v513
        %519 = vrot.lane.b32.xlu0 %v359, 96
        %v520 = vpop.permute.xlu0 %519
        %521 = vrot.lane.b32.xlu0 %v366, 96
        %v522 = vpop.permute.xlu0 %521
        %523 = vrot.lane.b32.xlu0 %v369, 96
        %v524 = vpop.permute.xlu0 %523
        %525 = vrot.lane.b32.xlu0 %v372, 96
        %v526 = vpop.permute.xlu0 %525
        %v531 = vcombine.low %v520, %v524
        %v532 = vcombine.high %v520, %v524
        %v534 = vunpack.c.l.s4 1983009808
        %v535 = vunpack.c.0.s8 %v534
        %v536 = vlaneseq
        %v537 = vshrl.u32 %v536, 7
        %v538 = vsub.s32 %v535, %v537
        %v539 = vrot.slane %v531, %v538
        %v541 = vunpack.c.l.s4 1983009808
        %v542 = vunpack.c.0.s8 %v541
        %v543 = vlaneseq
        %v544 = vshrl.u32 %v543, 7
        %v545 = vsub.s32 %v542, %v544
        %v546 = vrot.slane %v532, %v545
        %v547 = vcombine.low %v522, %v526
        %v548 = vcombine.high %v522, %v526
        %v550 = vunpack.c.l.s4 1983009808
        %v551 = vunpack.c.0.s8 %v550
        %v552 = vlaneseq
        %v553 = vshrl.u32 %v552, 7
        %v554 = vsub.s32 %v551, %v553
        %v555 = vrot.slane %v547, %v554
        %v557 = vunpack.c.l.s4 1983009808
        %v558 = vunpack.c.0.s8 %v557
        %v559 = vlaneseq
        %v560 = vshrl.u32 %v559, 7
        %v561 = vsub.s32 %v558, %v560
        %v562 = vrot.slane %v548, %v561
        %v563 = vcombine.low %v539, %v555
        %v564 = vcombine.high %v539, %v555
        %v566 = vunpack.c.l.s4 1934713408
        %v567 = vunpack.c.0.s8 %v566
        %v568 = vlaneseq
        %v569 = vshrl.u32 %v568, 7
        %v570 = vsub.s32 %v567, %v569
        %v571 = vrot.slane %v563, %v570
        %v573 = vunpack.c.l.s4 1934713408
        %v574 = vunpack.c.0.s8 %v573
        %v575 = vlaneseq
        %v576 = vshrl.u32 %v575, 7
        %v577 = vsub.s32 %v574, %v576
        %v578 = vrot.slane %v564, %v577
        %v579 = vcombine.low %v546, %v562
        %v580 = vcombine.high %v546, %v562
        %v582 = vunpack.c.l.s4 1934713408
        %v583 = vunpack.c.0.s8 %v582
        %v584 = vlaneseq
        %v585 = vshrl.u32 %v584, 7
        %v586 = vsub.s32 %v583, %v585
        %v587 = vrot.slane %v579, %v586
        %v589 = vunpack.c.l.s4 1934713408
        %v590 = vunpack.c.0.s8 %v589
        %v591 = vlaneseq
        %v592 = vshrl.u32 %v591, 7
        %v593 = vsub.s32 %v590, %v592
        %v594 = vrot.slane %v580, %v593
        %v595 = vcombine.high %v571, 0.0
        %v596 = vcombine.high %v578, 0.0
        %v597 = vcombine.high %v587, 0.0
        %v598 = vcombine.high %v594, 0.0
        %v599 = vcombine.low %v571, %v578
        %v601 = vunpack.c.l.s4 1983009808
        %v602 = vunpack.c.0.s8 %v601
        %v603 = vlaneseq
        %v604 = vshrl.u32 %v603, 7
        %v605 = vsub.s32 %v602, %v604
        %v606 = vrot.slane %v599, %v605
        %v607 = vcombine.low %v595, %v596
        %v609 = vunpack.c.l.s4 1983009808
        %v610 = vunpack.c.0.s8 %v609
        %v611 = vlaneseq
        %v612 = vshrl.u32 %v611, 7
        %v613 = vsub.s32 %v610, %v612
        %v614 = vrot.slane %v607, %v613
        %v615 = vcombine.low %v587, %v594
        %v617 = vunpack.c.l.s4 1983009808
        %v618 = vunpack.c.0.s8 %v617
        %v619 = vlaneseq
        %v620 = vshrl.u32 %v619, 7
        %v621 = vsub.s32 %v618, %v620
        %v622 = vrot.slane %v615, %v621
        %v623 = vcombine.low %v597, %v598
        %v625 = vunpack.c.l.s4 1983009808
        %v626 = vunpack.c.0.s8 %v625
        %v627 = vlaneseq
        %v628 = vshrl.u32 %v627, 7
        %v629 = vsub.s32 %v626, %v628
        %v630 = vrot.slane %v623, %v629
        %v631 = vcombine.low %v606, %v614
        %v632 = vcombine.high %v606, %v614
        %v634 = vunpack.c.l.s4 1934713408
        %v635 = vunpack.c.0.s8 %v634
        %v636 = vlaneseq
        %v637 = vshrl.u32 %v636, 7
        %v638 = vsub.s32 %v635, %v637
        %v639 = vrot.slane %v631, %v638
        %v641 = vunpack.c.l.s4 1934713408
        %v642 = vunpack.c.0.s8 %v641
        %v643 = vlaneseq
        %v644 = vshrl.u32 %v643, 7
        %v645 = vsub.s32 %v642, %v644
        %v646 = vrot.slane %v632, %v645
        %v647 = vcombine.low %v622, %v630
        %v648 = vcombine.high %v622, %v630
        %v650 = vunpack.c.l.s4 1934713408
        %v651 = vunpack.c.0.s8 %v650
        %v652 = vlaneseq
        %v653 = vshrl.u32 %v652, 7
        %v654 = vsub.s32 %v651, %v653
        %v655 = vrot.slane %v647, %v654
        %v657 = vunpack.c.l.s4 1934713408
        %v658 = vunpack.c.0.s8 %v657
        %v659 = vlaneseq
        %v660 = vshrl.u32 %v659, 7
        %v661 = vsub.s32 %v658, %v660
        %v662 = vrot.slane %v648, %v661
        %v663 = vcombine.low %v639, %v655
        %v664 = vcombine.high %v639, %v655
        %v665 = vcombine.low %v646, %v662
        %v666 = vcombine.high %v646, %v662
        %v667 = vpack.c.bf16 %v663, %v663
        %v668 = vpack.c.bf16 %v664, %v664
        %v669 = vpack.c.bf16 %v665, %v665
        %v670 = vpack.c.bf16 %v666, %v666
        %671 = vst.msk [vmem:[%s286] sm:$0xf] %vm514, %v667
        %672 = vst.msk [vmem:[%s286 + $0x4] sm:$0xf] %vm514, %v668
        %673 = vst.msk [vmem:[%s286 + $0x8] sm:$0xf] %vm514, %v669
        %674 = vst.msk [vmem:[%s286 + $0xc] sm:$0xf] %vm514, %v670
        %675 = vrot.lane.b32.xlu0 %v359, 64
        %v676 = vpop.permute.xlu0 %675
        %677 = vrot.lane.b32.xlu0 %v366, 64
        %v678 = vpop.permute.xlu0 %677
        %679 = vrot.lane.b32.xlu0 %v369, 64
        %v680 = vpop.permute.xlu0 %679
        %681 = vrot.lane.b32.xlu0 %v372, 64
        %v682 = vpop.permute.xlu0 %681
        %v687 = vcombine.low %v676, %v680
        %v688 = vcombine.high %v676, %v680
        %v690 = vunpack.c.l.s4 1983009808
        %v691 = vunpack.c.0.s8 %v690
        %v692 = vlaneseq
        %v693 = vshrl.u32 %v692, 7
        %v694 = vsub.s32 %v691, %v693
        %v695 = vrot.slane %v687, %v694
        %v697 = vunpack.c.l.s4 1983009808
        %v698 = vunpack.c.0.s8 %v697
        %v699 = vlaneseq
        %v700 = vshrl.u32 %v699, 7
        %v701 = vsub.s32 %v698, %v700
        %v702 = vrot.slane %v688, %v701
        %v703 = vcombine.low %v678, %v682
        %v704 = vcombine.high %v678, %v682
        %v706 = vunpack.c.l.s4 1983009808
        %v707 = vunpack.c.0.s8 %v706
        %v708 = vlaneseq
        %v709 = vshrl.u32 %v708, 7
        %v710 = vsub.s32 %v707, %v709
        %v711 = vrot.slane %v703, %v710
        %v713 = vunpack.c.l.s4 1983009808
        %v714 = vunpack.c.0.s8 %v713
        %v715 = vlaneseq
        %v716 = vshrl.u32 %v715, 7
        %v717 = vsub.s32 %v714, %v716
        %v718 = vrot.slane %v704, %v717
        %v719 = vcombine.low %v695, %v711
        %v720 = vcombine.high %v695, %v711
        %v722 = vunpack.c.l.s4 1934713408
        %v723 = vunpack.c.0.s8 %v722
        %v724 = vlaneseq
        %v725 = vshrl.u32 %v724, 7
        %v726 = vsub.s32 %v723, %v725
        %v727 = vrot.slane %v719, %v726
        %v729 = vunpack.c.l.s4 1934713408
        %v730 = vunpack.c.0.s8 %v729
        %v731 = vlaneseq
        %v732 = vshrl.u32 %v731, 7
        %v733 = vsub.s32 %v730, %v732
        %v734 = vrot.slane %v720, %v733
        %v735 = vcombine.low %v702, %v718
        %v736 = vcombine.high %v702, %v718
        %v738 = vunpack.c.l.s4 1934713408
        %v739 = vunpack.c.0.s8 %v738
        %v740 = vlaneseq
        %v741 = vshrl.u32 %v740, 7
        %v742 = vsub.s32 %v739, %v741
        %v743 = vrot.slane %v735, %v742
        %v745 = vunpack.c.l.s4 1934713408
        %v746 = vunpack.c.0.s8 %v745
        %v747 = vlaneseq
        %v748 = vshrl.u32 %v747, 7
        %v749 = vsub.s32 %v746, %v748
        %v750 = vrot.slane %v736, %v749
        %v751 = vcombine.high %v727, 0.0
        %v752 = vcombine.high %v734, 0.0
        %v753 = vcombine.high %v743, 0.0
        %v754 = vcombine.high %v750, 0.0
        %v755 = vcombine.low %v727, %v734
        %v757 = vunpack.c.l.s4 1983009808
        %v758 = vunpack.c.0.s8 %v757
        %v759 = vlaneseq
        %v760 = vshrl.u32 %v759, 7
        %v761 = vsub.s32 %v758, %v760
        %v762 = vrot.slane %v755, %v761
        %v763 = vcombine.low %v751, %v752
        %v765 = vunpack.c.l.s4 1983009808
        %v766 = vunpack.c.0.s8 %v765
        %v767 = vlaneseq
        %v768 = vshrl.u32 %v767, 7
        %v769 = vsub.s32 %v766, %v768
        %v770 = vrot.slane %v763, %v769
        %v771 = vcombine.low %v743, %v750
        %v773 = vunpack.c.l.s4 1983009808
        %v774 = vunpack.c.0.s8 %v773
        %v775 = vlaneseq
        %v776 = vshrl.u32 %v775, 7
        %v777 = vsub.s32 %v774, %v776
        %v778 = vrot.slane %v771, %v777
        %v779 = vcombine.low %v753, %v754
        %v781 = vunpack.c.l.s4 1983009808
        %v782 = vunpack.c.0.s8 %v781
        %v783 = vlaneseq
        %v784 = vshrl.u32 %v783, 7
        %v785 = vsub.s32 %v782, %v784
        %v786 = vrot.slane %v779, %v785
        %v787 = vcombine.low %v762, %v770
        %v788 = vcombine.high %v762, %v770
        %v790 = vunpack.c.l.s4 1934713408
        %v791 = vunpack.c.0.s8 %v790
        %v792 = vlaneseq
        %v793 = vshrl.u32 %v792, 7
        %v794 = vsub.s32 %v791, %v793
        %v795 = vrot.slane %v787, %v794
        %v797 = vunpack.c.l.s4 1934713408
        %v798 = vunpack.c.0.s8 %v797
        %v799 = vlaneseq
        %v800 = vshrl.u32 %v799, 7
        %v801 = vsub.s32 %v798, %v800
        %v802 = vrot.slane %v788, %v801
        %v803 = vcombine.low %v778, %v786
        %v804 = vcombine.high %v778, %v786
        %v806 = vunpack.c.l.s4 1934713408
        %v807 = vunpack.c.0.s8 %v806
        %v808 = vlaneseq
        %v809 = vshrl.u32 %v808, 7
        %v810 = vsub.s32 %v807, %v809
        %v811 = vrot.slane %v803, %v810
        %v813 = vunpack.c.l.s4 1934713408
        %v814 = vunpack.c.0.s8 %v813
        %v815 = vlaneseq
        %v816 = vshrl.u32 %v815, 7
        %v817 = vsub.s32 %v814, %v816
        %v818 = vrot.slane %v804, %v817
        %v819 = vcombine.low %v795, %v811
        %v820 = vcombine.high %v795, %v811
        %v821 = vcombine.low %v802, %v818
        %v822 = vcombine.high %v802, %v818
        %v823 = vpack.c.bf16 %v819, %v819
        %v824 = vpack.c.bf16 %v820, %v820
        %v825 = vpack.c.bf16 %v821, %v821
        %v826 = vpack.c.bf16 %v822, %v822
        %827 = vst.msk [vmem:[%s293] sm:$0xf] %vm514, %v823
        %828 = vst.msk [vmem:[%s293 + $0x4] sm:$0xf] %vm514, %v824
        %829 = vst.msk [vmem:[%s293 + $0x8] sm:$0xf] %vm514, %v825
        %830 = vst.msk [vmem:[%s293 + $0xc] sm:$0xf] %vm514, %v826
        %s831 = sand.u32 %s119, 1
        %s832 = scalar_lea.sflag [#allocation4], %s831
        %s833 = sand.u32 %s119, 1
        %s834 = smul.addr %s833, 16
        %s835 = scalar_lea.vmem [#allocation7], %s834
        %s836 = sand.u32 %s27, 1
        %s837 = scalar_lea.sflag [#allocation9], %s836
        %s838 = sand.u32 %s147, 1
        %s839 = smul.addr %s838, 16
        %s840 = scalar_lea.vmem [#allocation8], %s839
        %s841 = sand.u32 %s27, 1
        %s842 = scalar_lea.sflag [#allocation9], %s841
        %s843 = sand.u32 %s175, 1
        %s844 = smul.addr %s843, 16
        %s845 = scalar_lea.vmem [#allocation10], %s844
        // Predicated region
        $region41: #{tpu_custom_call.1} parent=31 // pred_check
          %p846 = pneg %p129
        $region42: #{tpu_custom_call.1} parent=31 // pred_check_branch
          %848 = sbr.rel (%p846) target = $region44
        $region43: #{tpu_custom_call.1} parent=31 // pred_region
          %s850 = ssub.s32 256, 256
          %851 = vsyncadd %s832, %s850
          %s852 = smul.addr %s31, 4
          %s853 = sadd.s32 %s32, %s852
          %s854 = smul.addr %s853, 64
          %s855 = scalar_lea.hbm %s3, %s854
          %s856 = sshll.u32 %s835, 4
          %s857 = int_to_ptr.vmem [resolvable:$true] %s856
          %862 = dma.vmem_to_hbm [thread:$0]  %s857, 256, %s855, %s832, 64, 64, 4
        $region44: #{tpu_custom_call.1} parent=31 // pred_fallthru
          _
        // Predicated region
        $region45: #{tpu_custom_call.1} parent=31 // pred_check
          %p863 = pneg %p157
        $region46: #{tpu_custom_call.1} parent=31 // pred_check_branch
          %865 = sbr.rel (%p863) target = $region48
        $region47: #{tpu_custom_call.1} parent=31 // pred_region
          %s867 = ssub.s32 256, 256
          %868 = vsyncadd %s837, %s867
          %s869 = smul.addr %s31, 4
          %s870 = sadd.s32 %s32, %s869
          %s871 = smul.addr %s870, 64
          %s872 = scalar_lea.hbm %s4, %s871
          %s873 = sshll.u32 %s840, 4
          %s874 = int_to_ptr.vmem [resolvable:$true] %s873
          %879 = dma.vmem_to_hbm [thread:$0]  %s874, 256, %s872, %s837, 64, 64, 4
        $region48: #{tpu_custom_call.1} parent=31 // pred_fallthru
          _
        // Predicated region
        $region49: #{tpu_custom_call.1} parent=31 // pred_check
          %p880 = pneg %p185
        $region50: #{tpu_custom_call.1} parent=31 // pred_check_branch
          %882 = sbr.rel (%p880) target = $region52
        $region51: #{tpu_custom_call.1} parent=31 // pred_region
          %s884 = ssub.s32 256, 256
          %885 = vsyncadd %s842, %s884
          %s886 = smul.addr %s31, 4
          %s887 = sadd.s32 %s32, %s886
          %s888 = smul.addr %s887, 64
          %s889 = scalar_lea.hbm %s5, %s888
          %s890 = sshll.u32 %s845, 4
          %s891 = int_to_ptr.vmem [resolvable:$true] %s890
          %896 = dma.vmem_to_hbm [thread:$0]  %s891, 256, %s889, %s842, 64, 64, 4
        $region52: #{tpu_custom_call.1} parent=31 // pred_fallthru
          _
      $region32: #{tpu_custom_call.1} parent=5 // pred_fallthru
        _
      %p897 = scmp.le.s32.totalorder 2, %s22
      // Predicated region
      $region53: #{tpu_custom_call.1} parent=5 // pred_check
        %p898 = pneg %p897
      $region54: #{tpu_custom_call.1} parent=5 // pred_check_branch
        %900 = sbr.rel (%p898) target = $region56
      $region55: #{tpu_custom_call.1} parent=5 // pred_region
        %s901 = ssub.s32 %s22, 2
        // Predicated region
        $region57: #{tpu_custom_call.1} parent=55 // pred_check
          %p902 = pneg %p135
        $region58: #{tpu_custom_call.1} parent=55 // pred_check_branch
          %904 = sbr.rel (%p902) target = $region60
        $region59: #{tpu_custom_call.1} parent=55 // pred_region
          %s905 = sand.u32 %s120, 1
          %s906 = scalar_lea.sflag [#allocation4], %s905
          %s907 = sand.u32 %s120, 1
          %s908 = smul.addr %s907, 16
          %s909 = scalar_lea.vmem [#allocation7], %s908
          %910 = dma.done %s906, 256
        $region60: #{tpu_custom_call.1} parent=55 // pred_fallthru
          _
        // Predicated region
        $region61: #{tpu_custom_call.1} parent=55 // pred_check
          %p911 = pneg %p163
        $region62: #{tpu_custom_call.1} parent=55 // pred_check_branch
          %913 = sbr.rel (%p911) target = $region64
        $region63: #{tpu_custom_call.1} parent=55 // pred_region
          %s914 = sand.u32 %s28, 1
          %s915 = scalar_lea.sflag [#allocation9], %s914
          %s916 = sand.u32 %s148, 1
          %s917 = smul.addr %s916, 16
          %s918 = scalar_lea.vmem [#allocation8], %s917
          %919 = dma.done %s915, 256
        $region64: #{tpu_custom_call.1} parent=55 // pred_fallthru
          _
        // Predicated region
        $region65: #{tpu_custom_call.1} parent=55 // pred_check
          %p920 = pneg %p191
        $region66: #{tpu_custom_call.1} parent=55 // pred_check_branch
          %922 = sbr.rel (%p920) target = $region68
        $region67: #{tpu_custom_call.1} parent=55 // pred_region
          %s923 = sand.u32 %s28, 1
          %s924 = scalar_lea.sflag [#allocation9], %s923
          %s925 = sand.u32 %s176, 1
          %s926 = smul.addr %s925, 16
          %s927 = scalar_lea.vmem [#allocation10], %s926
          %928 = dma.done %s924, 256
        $region68: #{tpu_custom_call.1} parent=55 // pred_fallthru
          _
      $region56: #{tpu_custom_call.1} parent=5 // pred_fallthru
        _
    $region6: #{tpu_custom_call.1} parent=1 // loop_footer
      %s26 = sadd.s32 1, %s22
    $region7: #{tpu_custom_call.1} parent=1 // loop_footer_branch
      %21 = sbr.rel target = $region3
    $region8: #{tpu_custom_call.1} parent=1 // loop_exit
      _
    %929 = vsyncpa [#allocation3], 1
    %s930 = scalar_lea.sflag [#allocation3], 1
    %931 = vsyncpa %s930, 1
    %932 = vsyncpa [#allocation6], 1
    %933 = vsyncpa [#allocation4], 1
    %s934 = scalar_lea.sflag [#allocation4], 1
    %935 = vsyncpa %s934, 1
    %936 = vsyncpa [#allocation9], 1
    %s937 = scalar_lea.sflag [#allocation9], 1
    %938 = vsyncpa %s937, 1

</llo_original>
